<compile_context>
chip_gen: v7x
topology: tpu7x:2x2x1
jax: 0.10.0
libtpu: 0.0.40
codegen_flags: <defaults>
</compile_context>

<pallas_src>
import jax
import jax.numpy as jnp
from jax.experimental import pallas as pl
from jax.experimental.pallas import tpu as pltpu


def _drop_path_kernel(mask_ref, x_ref, o_ref):
    # mask_ref: (tile_r, 1) per-row keep mask, pre-scaled by 1/keep_prob.
    # x_ref / o_ref: (tile_r, L) lane-dense activation tile.
    o_ref[...] = (x_ref[...] * mask_ref[...]).astype(o_ref.dtype)


def _round_down(x, m):
    return max(m, (x // m) * m)


def _round_up(x, m):
    return ((x + m - 1) // m) * m


def drop_path_pallas(x, drop_prob, key, *, donate_input=False):
    """Stochastic depth: per-sample (axis 0) Bernoulli keep mask scaled by 1/keep_prob."""
    orig_shape = x.shape
    b = orig_shape[0]
    feat = 1
    for d in orig_shape[1:]:
        feat *= d

    keep_prob = 1.0 - float(drop_prob)
    if keep_prob <= 0.0:
        # drop_prob >= 1.0: everything dropped; avoid 1/keep_prob = inf -> NaN.
        return jnp.zeros_like(x)

    itemsize = jnp.dtype(x.dtype).itemsize
    # Keep the mask in a >=16-bit float so fp8/int8 inputs don't quantize the
    # 1/keep_prob scale; the kernel casts only the product back to x.dtype.
    mask_dtype = x.dtype if itemsize >= 2 else jnp.bfloat16
    mask_itemsize = jnp.dtype(mask_dtype).itemsize

    keep = jax.random.bernoulli(key, p=keep_prob, shape=(b, 1))
    scaled_mask = (keep.astype(jnp.float32) * (1.0 / keep_prob)).astype(mask_dtype)

    sub = max(8, 32 // itemsize)        # sublane packing for x.dtype (8/16/32)
    target_bytes = 8 * 1024 * 1024      # ~8 MiB streamed x tile (amortizes ~0.35us/step)
    vmem_budget = 40 * 1024 * 1024      # keep headroom under the 48 MiB limit below

    # ---- pick a lane-dense, batch-size-agnostic (rows, L) view ---------------
    lane = None
    for cand in (2048, 1024, 512, 256, 128):
        if feat % cand == 0:
            lane = cand
            break

    if lane is not None:
        rows_per_sample = feat // lane
        rows = b * rows_per_sample
        x2 = x.reshape(rows, lane)
        mask_rows = jnp.repeat(scaled_mask, rows_per_sample, axis=0)   # (rows, 1)

        # (rows, 1) mask blocks pad the lane dim to 128 in VMEM -> budget for it.
        mask_row_pad = 128 * mask_itemsize
        per_row_vmem = 2 * (2 * lane * itemsize + mask_row_pad)        # dbl-buffered
        tile_r = min(
            _round_down(target_bytes // (lane * itemsize), sub),
            _round_down(vmem_budget // per_row_vmem, sub),
        )

        if tile_r >= rows:
            tile_r = rows          # full dim -> always a legal block shape
            # With enough work, split into two even tiles so v7x's two TensorCores
            # (parallel grid axis) both stream half of a bandwidth-bound kernel.
            half = rows // 2
            if rows * lane * itemsize >= (1 << 20) and half % sub == 0:
                tile_r = half
        else:
            num_tiles = pl.cdiv(rows, tile_r)
            if num_tiles % 2 == 1:          # prefer an even tile count for v7x
                cand_r = _round_up(pl.cdiv(rows, num_tiles + 1), sub)
                if cand_r >= sub:
                    tile_r = cand_r

        grid = (pl.cdiv(rows, tile_r),)
        in_specs = [
            pl.BlockSpec((tile_r, 1), lambda i: (i, 0)),       # per-row scaled mask
            pl.BlockSpec((tile_r, lane), lambda i: (i, 0)),    # streamed activation
        ]
        out_specs = pl.BlockSpec((tile_r, lane), lambda i: (i, 0))
        out_shape = jax.ShapeDtypeStruct((rows, lane), x.dtype)
        mask_bytes = rows * mask_itemsize
    else:
        # Fallback: feature size not a multiple of 128. Keep (B, feat) and tile the
        # feature axis in 128-multiples (Pallas masks the remainder block).
        rows = b
        x2 = x.reshape(b, feat)
        mask_rows = scaled_mask                                # (B, 1), resident
        rows_pad = _round_up(b, sub)
        tile_f = _round_down(target_bytes // (rows_pad * itemsize), 128)
        if tile_f >= feat:
            tile_f = feat                                      # full dim, single tile
        grid = (pl.cdiv(feat, tile_f),)
        in_specs = [
            pl.BlockSpec((b, 1), lambda i: (0, 0)),            # resident mask
            pl.BlockSpec((b, tile_f), lambda i: (0, i)),
        ]
        out_specs = pl.BlockSpec((b, tile_f), lambda i: (0, i))
        out_shape = jax.ShapeDtypeStruct((b, feat), x.dtype)
        mask_bytes = b * mask_itemsize

    out = pl.pallas_call(
        _drop_path_kernel,
        out_shape=out_shape,
        grid=grid,
        in_specs=in_specs,
        out_specs=out_specs,
        compiler_params=pltpu.CompilerParams(
            dimension_semantics=("parallel",),      # shard tiles across v7x's 2 TCs
            vmem_limit_bytes=48 * 1024 * 1024,      # 8 MiB tiles need > the 32 MiB default
        ),
        cost_estimate=pl.CostEstimate(
            flops=b * feat,
            transcendentals=0,
            bytes_accessed=2 * b * feat * itemsize + mask_bytes,
        ),
        # Donate x's HBM buffer into the output when the caller doesn't reuse it.
        input_output_aliases=({1: 0} if donate_input else {}),
    )(mask_rows, x2)
    return out.reshape(orig_shape)


class DropPath:
    """JAX/Pallas equivalent of the PyTorch DropPath module (no parameters)."""

    def __init__(self, drop_prob=None):
        self.drop_prob = drop_prob
        self.training = True
        self._call_count = 0   # fallback RNG stream when no key is threaded

    def __call__(self, x, key=None):
        # Identity path: eval mode or zero drop probability (matches PyTorch).
        if (self.drop_prob is None) or (self.drop_prob == 0.0) or (not self.training):
            return x
        if key is None:
            # TODO(synk): thread a real PRNG key from the training loop; this
            # stateful fallback only de-correlates eager (non-jit) calls.
            key = jax.random.fold_in(jax.random.PRNGKey(0), self._call_count)
            self._call_count += 1
        return drop_path_pallas(x, self.drop_prob, key)


if __name__ == "__main__":
    root = jax.random.PRNGKey(0)
    kx, kmask = jax.random.split(root)
    # Small NCHW input consistent with a residual-block activation.
    x = jax.random.normal(kx, (2, 4, 16, 16), dtype=jnp.float32)

    drop_prob = 0.3
    keep_prob = 1.0 - drop_prob
    module = DropPath(drop_prob=drop_prob)

    # Training path: each sample is either zeroed or scaled by 1/keep_prob.
    y_train = module(x, key=kmask)
    jax.block_until_ready(y_train)
    assert y_train.shape == x.shape
    x_scaled = x / keep_prob
    for i in range(x.shape[0]):
        kept = bool(jnp.allclose(y_train[i], x_scaled[i], atol=1e-5))
        dropped = bool(jnp.allclose(y_train[i], 0.0, atol=1e-6))
        assert kept or dropped, "sample is neither kept-and-scaled nor dropped"

    # Fallback layout path: feature size not a multiple of 128.
    x_odd = jax.random.normal(kx, (2, 3, 5, 7), dtype=jnp.float32)
    y_odd = drop_path_pallas(x_odd, drop_prob, kmask)
    jax.block_until_ready(y_odd)
    assert y_odd.shape == x_odd.shape
    x_odd_scaled = x_odd / keep_prob
    for i in range(x_odd.shape[0]):
        kept = bool(jnp.allclose(y_odd[i], x_odd_scaled[i], atol=1e-5))
        dropped = bool(jnp.allclose(y_odd[i], 0.0, atol=1e-6))
        assert kept or dropped, "fallback sample is neither kept-and-scaled nor dropped"

    # Eval path is identity.
    module.training = False
    y_eval = module(x)
    jax.block_until_ready(y_eval)
    assert y_eval.shape == x.shape
    assert bool(jnp.allclose(y_eval, x))

    print("KERNEL_OK")
</pallas_src>

<mosaic_0001>
module attributes {stable_mosaic.version = 11 : i64} {
  func.func @_drop_path_kernel(%arg0: i32, %arg1: memref<2x1xf32, #tpu.memory_space<vmem>>, %arg2: memref<2x1024xf32, #tpu.memory_space<vmem>>, %arg3: memref<2x1024xf32, #tpu.memory_space<vmem>>) attributes {dimension_semantics = [#tpu.dimension_semantics<parallel>], iteration_bounds = array<i64: 1>, scalar_prefetch = 0 : i64, scratch_operands = 0 : i64, tpu.core_type = #tpu.core_type<tc>, window_params = [{transform_indices = @transform_0, window_bounds = array<i64: 2, 1>}, {transform_indices = @transform_1, window_bounds = array<i64: 2, 1024>}, {transform_indices = @transform_2, window_bounds = array<i64: 2, 1024>}]} {
    %c0 = arith.constant 0 : index
    %c0_0 = arith.constant 0 : index
    %0 = vector.load %arg2[%c0, %c0_0] : memref<2x1024xf32, #tpu.memory_space<vmem>>, vector<2x1024xf32>
    %c0_1 = arith.constant 0 : index
    %c0_2 = arith.constant 0 : index
    %1 = vector.load %arg1[%c0_1, %c0_2] : memref<2x1xf32, #tpu.memory_space<vmem>>, vector<2x1xf32>
    %2 = vector.broadcast %1 : vector<2x1xf32> to vector<2x1024xf32>
    %3 = arith.mulf %0, %2 : vector<2x1024xf32>
    %c0_3 = arith.constant 0 : index
    %c0_4 = arith.constant 0 : index
    %4 = vector.load %arg3[%c0_3, %c0_4] : memref<2x1024xf32, #tpu.memory_space<vmem>>, vector<2x1024xf32>
    tpu.vector_store %arg3[%c0_3, %c0_4], %3 {strides = array<i32>} : memref<2x1024xf32, #tpu.memory_space<vmem>>, vector<2x1024xf32>,
    return
  }
  func.func @transform_0(%arg0: i32) -> (i32, i32) {
    %c0_i32 = arith.constant 0 : i32
    %c0_i32_0 = arith.constant 0 : i32
    return %arg0, %c0_i32 : i32, i32
  }
  func.func @transform_1(%arg0: i32) -> (i32, i32) {
    %c0_i32 = arith.constant 0 : i32
    %c0_i32_0 = arith.constant 0 : i32
    return %arg0, %c0_i32 : i32, i32
  }
  func.func @transform_2(%arg0: i32) -> (i32, i32) {
    %c0_i32 = arith.constant 0 : i32
    %c0_i32_0 = arith.constant 0 : i32
    return %arg0, %c0_i32 : i32, i32
  }
}

</mosaic_0001>

<llo_original>
// kernel: tpu_custom_call.1
$region0: #{tpu_custom_call.1}
  #allocation0 [shape = 'u32[]', space=smem, size = 0x4, offset = 0x4, fixed_abs, tag = 'smem constant byte address 0x4 - core index']
  #allocation1 [shape = 'u32[144,128]{1,0:T(1,128)}', space=vmem, size = 0x12000, scoped, tag = 'internal scratch']
  %s0 = inlined_call_operand.vmem [shape: f32[2,1], index: 0, kind: input, shape index: {}]
  %s1 = inlined_call_operand.hbm [shape: f32[2,1024], index: 1, kind: input, shape index: {}]
  %s2 = inlined_call_operand.hbm [shape: f32[2,1024], index: 2, kind: output, shape index: {}]
  %s3 = sld [smem:[#allocation0]]
  $region22: #{tpu_custom_call.1} parent=0
    _
  %s5 = ssub.s32 1, %s3
  %s6 = scalar_select 0, %s5, %s3
  $region1: #{tpu_custom_call.1} parent=0
    #allocation2 [shape = 'u8[8192]{0}', space=vmem, size = 0x2000, scoped, tag = 'input window, operand 1, single buffered']
    #allocation3 [shape = 's32[1]{0}', space=sflag, size = 0x4, scoped, tag = 'scoped memory for tpu_custom_call.1']
    #allocation4 [shape = 's32[1]{0}', space=sflag, size = 0x4, scoped, tag = 'scoped memory for tpu_custom_call.1']
    #allocation5 [shape = 'u8[8192]{0}', space=vmem, size = 0x2000, scoped, tag = 'output window, operand 0, single buffered']
    %7 = vsyncpa [#allocation3], 0
    %8 = vsyncpa [#allocation4], 0
    // Predicated region
    $region2: #{tpu_custom_call.1} parent=1 // pred_check
      _
    $region3: #{tpu_custom_call.1} parent=1 // pred_check_branch
      %10 = sbr.rel (0) target = $region5
    $region4: #{tpu_custom_call.1} parent=1 // pred_region
      _
    $region5: #{tpu_custom_call.1} parent=1 // pred_fallthru
      _
    // Predicated region
    $region6: #{tpu_custom_call.1} parent=1 // pred_check
      _
    $region7: #{tpu_custom_call.1} parent=1 // pred_check_branch
      %12 = sbr.rel (0) target = $region9
    $region8: #{tpu_custom_call.1} parent=1 // pred_region
      %s14 = ssub.s32 256, 256
      %15 = vsyncadd [#allocation3], %s14
      %s17 = sshll.u32 [#allocation2], 4
      %s18 = int_to_ptr.vmem [resolvable:$true] %s17
      %20 = dma.hbm_to_vmem [thread:$0]  %s1, 256, %s18, [#allocation3]
    $region9: #{tpu_custom_call.1} parent=1 // pred_fallthru
      _
    // Predicated region
    $region10: #{tpu_custom_call.1} parent=1 // pred_check
      _
    $region11: #{tpu_custom_call.1} parent=1 // pred_check_branch
      %22 = sbr.rel (0) target = $region13
    $region12: #{tpu_custom_call.1} parent=1 // pred_region
      %23 = dma.done [#allocation3], 256
    $region13: #{tpu_custom_call.1} parent=1 // pred_fallthru
      _
    %v24 = vld [vmem:[#allocation2] sm:$0xff]
    %v25 = vld [vmem:[#allocation2 + $0x8] sm:$0xff]
    %v26 = vld [vmem:[%s0] sm:$0x3]
    %28 = vset.pattern.permute.xlu0 0
    %29 = vperm.xlu0 %28, %v26
    %v30 = vpop.permute.xlu0 %29
    %v32 = vunpack.c.l.s4 269488144
    %v33 = vunpack.c.0.s8 %v32
    %v34 = vlaneseq
    %v35 = vshrl.u32 %v34, 7
    %v36 = vsub.s32 %v33, %v35
    %v37 = vrot.slane %v30, %v36
    %v39 = vmul.f32 %v24, %v37
    %v40 = vmul.f32 %v25, %v37
    %41 = vst [vmem:[#allocation5] sm:$0xff] %v39
    %42 = vst [vmem:[#allocation5 + $0x8] sm:$0xff] %v40
    // Predicated region
    $region14: #{tpu_custom_call.1} parent=1 // pred_check
      _
    $region15: #{tpu_custom_call.1} parent=1 // pred_check_branch
      %44 = sbr.rel (0) target = $region17
    $region16: #{tpu_custom_call.1} parent=1 // pred_region
      %s46 = ssub.s32 256, 256
      %47 = vsyncadd [#allocation4], %s46
      %s49 = sshll.u32 [#allocation5], 4
      %s50 = int_to_ptr.vmem [resolvable:$true] %s49
      %52 = dma.vmem_to_hbm [thread:$0]  %s50, 256, %s2, [#allocation4]
    $region17: #{tpu_custom_call.1} parent=1 // pred_fallthru
      _
    // Predicated region
    $region18: #{tpu_custom_call.1} parent=1 // pred_check
      _
    $region19: #{tpu_custom_call.1} parent=1 // pred_check_branch
      %54 = sbr.rel (0) target = $region21
    $region20: #{tpu_custom_call.1} parent=1 // pred_region
      %55 = dma.done [#allocation4], 256
    $region21: #{tpu_custom_call.1} parent=1 // pred_fallthru
      _
    %56 = vsyncpa [#allocation3], 1
    %57 = vsyncpa [#allocation4], 1

</llo_original>
